<compile_context>
chip_gen: v5e
topology: v5e:2x2
jax: 0.10.0
libtpu: 0.0.40
codegen_flags: <defaults>
</compile_context>

<pallas_src>
import jax
import jax.numpy as jnp
from jax.experimental import pallas as pl
from jax.experimental.pallas import tpu as pltpu


# ---------------------------------------------------------------------------
# Hardware-aware budgets
# ---------------------------------------------------------------------------
def _hw_budgets():
    """Returns (vmem_limit_bytes, weight_residency_budget_bytes, two_core_hint)."""
    cap = None
    try:
        info = pltpu.get_tpu_info()
        cap = getattr(info, "vmem_capacity_bytes", None)
    except Exception:
        cap = None
    if cap is None:
        # Unknown generation: budgets safe for v7x's 64 MiB VMEM.
        return 40 << 20, 8 << 20, False
    if cap >= 96 << 20:                       # v5e / v6e: 128 MiB physical VMEM
        return 96 << 20, 20 << 20, False
    return 44 << 20, 8 << 20, True            # v7x: 64 MiB physical, 2 TensorCores


# ---------------------------------------------------------------------------
# Tile pickers.  All tiles are exact divisors of their dimension; the lane
# (last) dim is a multiple of 128 or the full extent, so every BlockSpec
# satisfies the TPU (8, 128) constraint.
# ---------------------------------------------------------------------------
def _lane_tile(dim, cap):
    """256-aligned (v6e/v7x MXU width) > 128-aligned divisor within cap, else
    the full extent (always legal)."""
    if dim <= cap:
        return dim
    for align in (256, 128):
        cands = [t for t in range(align, cap + 1, align) if dim % t == 0]
        if cands:
            return max(cands)
    return dim


def _row_tile(dim, granule, row_cap, prefer_split):
    """Largest granule-multiple divisor of dim within row_cap (full extent if
    none).  If prefer_split, prefer the largest tile that still leaves >= 2
    blocks so both v7x TensorCores get work."""
    cap = min(dim, max(row_cap, granule))
    cands = [t for t in range(granule, cap + 1, granule) if dim % t == 0]
    if not cands:
        return dim
    if prefer_split:
        two = [t for t in cands if dim // t >= 2]
        if two:
            return max(two)
    return max(cands)


# ---------------------------------------------------------------------------
# Kernel bodies (shared head)
#   z_ref: [tm, tk], w_ref: [tk, tn], b_ref: [1, tn], o_ref: [tm, tn]
# ---------------------------------------------------------------------------
def _shared_direct_kernel(z_ref, w_ref, b_ref, o_ref):
    # Whole reduction in one step: no f32 scratch, single lane-dense store.
    acc = jnp.dot(z_ref[...], w_ref[...], preferred_element_type=jnp.float32)
    o_ref[...] = (acc + b_ref[...].astype(jnp.float32)).astype(o_ref.dtype)


def _shared_accum_kernel(z_ref, w_ref, b_ref, o_ref, acc_ref):
    k = pl.program_id(2)

    @pl.when(k == 0)
    def _init():
        acc_ref[...] = jnp.zeros_like(acc_ref)

    acc_ref[...] += jnp.dot(z_ref[...], w_ref[...],
                            preferred_element_type=jnp.float32)

    @pl.when(k == pl.num_programs(2) - 1)
    def _finalize():
        o_ref[...] = (acc_ref[...] + b_ref[...].astype(jnp.float32)).astype(o_ref.dtype)
    # TODO(synk): head_dropout > 0 in training mode would need pltpu PRNG; eval is identity.


# ---------------------------------------------------------------------------
# Kernel bodies (individual head)
#   z_ref: [tb, V, tk], w_ref: [V, tk, tn], b_ref: [V, 1, tn], o_ref: [tb, V, tn]
# Per-variable 2-D dots unrolled over the small static n_vars axis.
# ---------------------------------------------------------------------------
def _indiv_direct_kernel(z_ref, w_ref, b_ref, o_ref):
    nv = z_ref.shape[1]
    for v in range(nv):
        acc = jnp.dot(z_ref[:, v, :], w_ref[v],
                      preferred_element_type=jnp.float32)
        o_ref[:, v, :] = (acc + b_ref[v].astype(jnp.float32)).astype(o_ref.dtype)


def _indiv_accum_kernel(z_ref, w_ref, b_ref, o_ref, acc_ref):
    k = pl.program_id(2)
    nv = z_ref.shape[1]

    @pl.when(k == 0)
    def _init():
        acc_ref[...] = jnp.zeros_like(acc_ref)

    for v in range(nv):                            # static unroll over n_vars
        acc_ref[v] += jnp.dot(z_ref[:, v, :], w_ref[v],
                              preferred_element_type=jnp.float32)

    @pl.when(k == pl.num_programs(2) - 1)
    def _finalize():
        for v in range(nv):
            o_ref[:, v, :] = (acc_ref[v]
                              + b_ref[v].astype(jnp.float32)).astype(o_ref.dtype)


# ---------------------------------------------------------------------------
# individual = False: one big tiled matmul, M = B * V.
# ---------------------------------------------------------------------------
def _shared_head(x, weight, bias):
    B, V, D, P = x.shape
    nf = D * P
    T = weight.shape[-1]
    M = B * V
    itemsize = jnp.dtype(x.dtype).itemsize
    granule = 16 if itemsize == 2 else 8

    z2 = x.reshape(M, nf)        # free: contiguous == Flatten(start_dim=-2), rows (b, v)
    w2 = weight.reshape(nf, T)   # free
    b2 = bias.reshape(1, T)      # free

    vmem_limit, w_budget, two_core = _hw_budgets()
    avail = vmem_limit - (2 << 20)               # headroom for compiler scratch
    weight_bytes = nf * T * itemsize

    # -- K / N tiles ---------------------------------------------------------
    resident = (weight_bytes <= w_budget
                and 2 * weight_bytes + 2 * granule * (nf + T) * itemsize
                    + 2 * T * itemsize <= avail)
    if resident:
        # Whole [nf, T] weight VMEM-resident (constant block index -> one HBM
        # fetch); no K loop, no f32 scratch.
        tk, tn = nf, T
    else:
        # Stream the weight in lane-aligned panels; panel double-buffer kept
        # under ~1/3 of the VMEM limit.
        tn = _lane_tile(T, 1024)
        tk_cap = max(128, (avail // 3) // max(2 * tn * itemsize, 1))
        tk = _lane_tile(nf, min(1024, tk_cap))

    gk = nf // tk
    gn = T // tn

    # -- M tile ---------------------------------------------------------------
    # Prefer a single M block in the streamed regime so the weight is read
    # from HBM exactly once; splitting M is free when the weight is resident
    # and is otherwise only forced on known multi-core (v7x) parts.
    fixed = (2 * tk * tn + 2 * tn) * itemsize                 # weight dbuf + bias dbuf
    per_row = (2 * tk + 2 * tn) * itemsize + (tn * 4 if gk > 1 else 0)
    row_cap = (avail - fixed) // max(per_row, 1)
    prefer_split = (gn < 2) and (resident or two_core)
    tm = _row_tile(M, granule, row_cap, prefer_split)
    gm = M // tm

    if gk == 1:
        kernel, scratch = _shared_direct_kernel, []
    else:
        kernel, scratch = _shared_accum_kernel, [pltpu.VMEM((tm, tn), jnp.float32)]

    z_passes = 1 if gk == 1 else gn
    w_passes = 1 if (gn == 1 and gk == 1) else gm

    out = pl.pallas_call(
        kernel,
        out_shape=jax.ShapeDtypeStruct((M, T), x.dtype),
        grid_spec=pltpu.PrefetchScalarGridSpec(
            num_scalar_prefetch=0,
            grid=(gm, gn, gk),
            in_specs=[
                pl.BlockSpec((tm, tk), lambda i, j, k: (i, k)),
                pl.BlockSpec((tk, tn), lambda i, j, k: (k, j)),   # no dep on i
                pl.BlockSpec((1, tn), lambda i, j, k: (0, j)),
            ],
            out_specs=pl.BlockSpec((tm, tn), lambda i, j, k: (i, j)),
            scratch_shapes=scratch,
        ),
        compiler_params=pltpu.CompilerParams(
            dimension_semantics=("parallel", "parallel", "arbitrary"),
            vmem_limit_bytes=vmem_limit,
        ),
        cost_estimate=pl.CostEstimate(
            flops=2 * M * nf * T,
            transcendentals=0,
            bytes_accessed=(z_passes * M * nf + w_passes * nf * T + T + M * T)
            * itemsize,
        ),
    )(z2, w2, b2)

    return out.reshape(B, V, T)      # free: row order is (b, v)


# ---------------------------------------------------------------------------
# individual = True: per-variable weights; x stays [B, V, nf] (no HBM transpose).
# ---------------------------------------------------------------------------
def _individual_head(x, weight, bias):
    B, V, D, P = x.shape
    nf = D * P
    T = weight.shape[-1]
    itemsize = jnp.dtype(x.dtype).itemsize
    granule = 16 if itemsize == 2 else 8

    z3 = x.reshape(B, V, nf)     # free; V kept full inside each block

    vmem_limit, w_budget, two_core = _hw_budgets()
    avail = vmem_limit - (2 << 20)
    weight_bytes = V * nf * T * itemsize

    resident = (weight_bytes <= w_budget
                and 2 * weight_bytes + 2 * granule * V * (nf + T) * itemsize
                    + 2 * V * T * itemsize <= avail)
    if resident:
        tk, tn = nf, T
    else:
        tn = _lane_tile(T, 1024)
        tk_cap = max(128, (avail // 3) // max(2 * V * tn * itemsize, 1))
        tk = _lane_tile(nf, min(1024, tk_cap))

    gk = nf // tk
    gn = T // tn

    fixed = (2 * V * tk * tn + 2 * V * tn) * itemsize
    per_row = V * ((2 * tk + 2 * tn) * itemsize + (tn * 4 if gk > 1 else 0))
    row_cap = (avail - fixed) // max(per_row, 1)
    prefer_split = (gn < 2) and (resident or two_core)
    tb = _row_tile(B, granule, row_cap, prefer_split)
    gb = B // tb

    if gk == 1:
        kernel, scratch = _indiv_direct_kernel, []
    else:
        kernel, scratch = _indiv_accum_kernel, [pltpu.VMEM((V, tb, tn), jnp.float32)]

    z_passes = 1 if gk == 1 else gn
    w_passes = 1 if (gn == 1 and gk == 1) else gb

    out = pl.pallas_call(
        kernel,
        out_shape=jax.ShapeDtypeStruct((B, V, T), x.dtype),
        grid_spec=pltpu.PrefetchScalarGridSpec(
            num_scalar_prefetch=0,
            grid=(gb, gn, gk),
            in_specs=[
                pl.BlockSpec((tb, V, tk), lambda i, j, k: (i, 0, k)),
                pl.BlockSpec((V, tk, tn), lambda i, j, k: (0, k, j)),  # no dep on i
                pl.BlockSpec((V, 1, tn), lambda i, j, k: (0, 0, j)),
            ],
            out_specs=pl.BlockSpec((tb, V, tn), lambda i, j, k: (i, 0, j)),
            scratch_shapes=scratch,
        ),
        compiler_params=pltpu.CompilerParams(
            dimension_semantics=("parallel", "parallel", "arbitrary"),
            vmem_limit_bytes=vmem_limit,
        ),
        cost_estimate=pl.CostEstimate(
            flops=2 * B * V * nf * T,
            transcendentals=0,
            bytes_accessed=(z_passes * B * V * nf + w_passes * V * nf * T
                            + V * T + B * V * T) * itemsize,
        ),
    )(z3, weight, bias)

    return out


def flatten_head_forward(x, weight, bias):
    """x: [B, V, D, P]; weight: [Vw, nf, T]; bias: [Vw, 1, T] with Vw in {1, V}."""
    B, V, D, P = x.shape
    Vw, nf_w, T = weight.shape
    assert nf_w == D * P
    if Vw == 1:
        return _shared_head(x, weight, bias)
    assert Vw == V
    return _individual_head(x, weight, bias)


# ---------------------------------------------------------------------------
# Reference + parameter construction
# ---------------------------------------------------------------------------
def _reference(x, weight, bias):
    B, V, D, P = x.shape
    nf = D * P
    z = x.reshape(B, V, nf).astype(jnp.float32)
    w = weight.astype(jnp.float32)
    b = bias.astype(jnp.float32)
    if w.shape[0] == 1:
        y = jnp.einsum("bvf,ft->bvt", z, w[0], precision=jax.lax.Precision.HIGHEST)
        return y + b[0, 0][None, None, :]
    y = jnp.einsum("bvf,vft->bvt", z, w, precision=jax.lax.Precision.HIGHEST)
    return y + b[:, 0, :][None, :, :]


def make_params(key, individual, n_vars, nf, target_window, dtype=jnp.float32):
    """Deterministic synthetic init mimicking nn.Linear's uniform(+-1/sqrt(nf))."""
    Vw = n_vars if individual else 1
    kw, kb = jax.random.split(key)
    bound = 1.0 / float(nf) ** 0.5
    # weight stored already transposed: [Vw, nf, target_window] so kernel does z @ W
    weight = jax.random.uniform(kw, (Vw, nf, target_window), dtype, -bound, bound)
    bias = jax.random.uniform(kb, (Vw, 1, target_window), dtype, -bound, bound)
    return weight, bias


if __name__ == "__main__":
    key = jax.random.PRNGKey(0)
    keys = jax.random.split(key, 10)

    # ---- small shapes consistent with the module ----
    B, V, D, P = 2, 4, 8, 4          # batch, n_vars, d_model, patch_num
    nf, T = D * P, 16                # nf=32, target_window=16
    x = jax.random.normal(keys[0], (B, V, D, P), jnp.float32)

    # individual = False (shared head) -> resident-weight direct path
    w_s, b_s = make_params(keys[1], individual=False, n_vars=V, nf=nf, target_window=T)
    y_s = jax.block_until_ready(flatten_head_forward(x, w_s, b_s))
    assert y_s.shape == (B, V, T)
    assert jnp.allclose(y_s, _reference(x, w_s, b_s), atol=1e-5, rtol=1e-5)

    # individual = True (per-variable heads)
    w_i, b_i = make_params(keys[2], individual=True, n_vars=V, nf=nf, target_window=T)
    y_i = jax.block_until_ready(flatten_head_forward(x, w_i, b_i))
    assert y_i.shape == (B, V, T)
    assert jnp.allclose(y_i, _reference(x, w_i, b_i), atol=1e-5, rtol=1e-5)

    # bf16 inputs stay bf16 on the MXU (f32 accumulation only)
    xb, wb, bb = (a.astype(jnp.bfloat16) for a in (x, w_s, b_s))
    y_bf = jax.block_until_ready(flatten_head_forward(xb, wb, bb))
    assert y_bf.dtype == jnp.bfloat16
    assert jnp.allclose(y_bf.astype(jnp.float32), _reference(xb, wb, bb),
                        atol=2e-2, rtol=2e-2)

    # ---- PatchTST-like lane-unfriendly dims (nf=672, T=360): full-extent lane blocks ----
    B3, V3, D3, P3, T3 = 2, 4, 16, 42, 360
    x3 = jax.random.normal(keys[3], (B3, V3, D3, P3), jnp.float32)
    w3, b3 = make_params(keys[4], individual=False, n_vars=V3, nf=D3 * P3,
                         target_window=T3)
    y3 = jax.block_until_ready(flatten_head_forward(x3, w3, b3))
    assert jnp.allclose(y3, _reference(x3, w3, b3), atol=5e-4, rtol=5e-4)

    # ---- larger shapes: resident shared head + streamed individual head ----
    B2, V2, D2, P2, T2 = 2, 4, 64, 32, 640     # nf = 2048
    x2 = jax.random.normal(keys[5], (B2, V2, D2, P2), jnp.float32)
    w_s2, b_s2 = make_params(keys[6], individual=False, n_vars=V2, nf=D2 * P2,
                             target_window=T2)
    y_s2 = jax.block_until_ready(flatten_head_forward(x2, w_s2, b_s2))
    assert jnp.allclose(y_s2, _reference(x2, w_s2, b_s2), atol=5e-4, rtol=5e-4)

    w_i2, b_i2 = make_params(keys[7], individual=True, n_vars=V2, nf=D2 * P2,
                             target_window=T2)
    y_i2 = jax.block_until_ready(flatten_head_forward(x2, w_i2, b_i2))
    assert jnp.allclose(y_i2, _reference(x2, w_i2, b_i2), atol=5e-4, rtol=5e-4)

    # ---- big weight: exercises the K-streamed accumulator path and the
    #      full-extent lane fallback (T=1440 has no 128-aligned divisor) ----
    B4, V4, D4, P4, T4 = 2, 4, 128, 32, 1440   # nf = 4096, weight ~23.6 MiB f32
    x4 = jax.random.normal(keys[8], (B4, V4, D4, P4), jnp.float32)
    w4, b4 = make_params(keys[9], individual=False, n_vars=V4, nf=D4 * P4,
                         target_window=T4)
    y4 = jax.block_until_ready(flatten_head_forward(x4, w4, b4))
    assert jnp.allclose(y4, _reference(x4, w4, b4), atol=1e-3, rtol=1e-3)

    print("KERNEL_OK")
</pallas_src>

<mosaic_0001>
module attributes {stable_mosaic.version = 11 : i64} {
  func.func @_shared_direct_kernel(%arg0: i32, %arg1: i32, %arg2: i32, %arg3: memref<8x32xf32, #tpu.memory_space<vmem>>, %arg4: memref<32x16xf32, #tpu.memory_space<vmem>>, %arg5: memref<1x16xf32, #tpu.memory_space<vmem>>, %arg6: memref<8x16xf32, #tpu.memory_space<vmem>>) attributes {dimension_semantics = [#tpu.dimension_semantics<parallel>, #tpu.dimension_semantics<parallel>, #tpu.dimension_semantics<arbitrary>], iteration_bounds = array<i64: 1, 1, 1>, scalar_prefetch = 0 : i64, scratch_operands = 0 : i64, tpu.core_type = #tpu.core_type<tc>, window_params = [{transform_indices = @transform_0, window_bounds = array<i64: 8, 32>}, {transform_indices = @transform_1, window_bounds = array<i64: 32, 16>}, {transform_indices = @transform_2, window_bounds = array<i64: 1, 16>}, {transform_indices = @transform_3, window_bounds = array<i64: 8, 16>}]} {
    %c0 = arith.constant 0 : index
    %c0_0 = arith.constant 0 : index
    %0 = vector.load %arg3[%c0, %c0_0] : memref<8x32xf32, #tpu.memory_space<vmem>>, vector<8x32xf32>
    %c0_1 = arith.constant 0 : index
    %c0_2 = arith.constant 0 : index
    %1 = vector.load %arg4[%c0_1, %c0_2] : memref<32x16xf32, #tpu.memory_space<vmem>>, vector<32x16xf32>
    %cst = arith.constant dense<0.000000e+00> : vector<8x16xf32>
    %2 = tpu.matmul %0, %1, %cst {dimension_numbers = #tpu.dot_dimension_numbers<[1], [0], [0], [1], [0, 0, 1, 1], [], []>} : vector<8x32xf32>, vector<32x16xf32>, vector<8x16xf32> -> vector<8x16xf32>
    %c0_3 = arith.constant 0 : index
    %c0_4 = arith.constant 0 : index
    %3 = vector.load %arg5[%c0_3, %c0_4] : memref<1x16xf32, #tpu.memory_space<vmem>>, vector<1x16xf32>
    %4 = vector.broadcast %3 : vector<1x16xf32> to vector<8x16xf32>
    %5 = arith.addf %2, %4 : vector<8x16xf32>
    %c0_5 = arith.constant 0 : index
    %c0_6 = arith.constant 0 : index
    %6 = vector.load %arg6[%c0_5, %c0_6] : memref<8x16xf32, #tpu.memory_space<vmem>>, vector<8x16xf32>
    tpu.vector_store %arg6[%c0_5, %c0_6], %5 {strides = array<i32>} : memref<8x16xf32, #tpu.memory_space<vmem>>, vector<8x16xf32>,
    return
  }
  func.func @transform_0(%arg0: i32, %arg1: i32, %arg2: i32) -> (i32, i32) {
    %c0_i32 = arith.constant 0 : i32
    return %arg0, %arg2 : i32, i32
  }
  func.func @transform_1(%arg0: i32, %arg1: i32, %arg2: i32) -> (i32, i32) {
    %c0_i32 = arith.constant 0 : i32
    return %arg2, %arg1 : i32, i32
  }
  func.func @transform_2(%arg0: i32, %arg1: i32, %arg2: i32) -> (i32, i32) {
    %c0_i32 = arith.constant 0 : i32
    %c0_i32_0 = arith.constant 0 : i32
    return %c0_i32, %arg1 : i32, i32
  }
  func.func @transform_3(%arg0: i32, %arg1: i32, %arg2: i32) -> (i32, i32) {
    %c0_i32 = arith.constant 0 : i32
    return %arg0, %arg1 : i32, i32
  }
}

</mosaic_0001>

<llo_original>
// kernel: tpu_custom_call.1
$region0: #{tpu_custom_call.1}
  #allocation0 [shape = 'u32[]', space=smem, size = 0x4, offset = 0x4, fixed_abs, tag = 'smem constant byte address 0x4 - core index']
  #allocation1 [shape = 'u32[72,128]{1,0:T(1,128)}', space=vmem, size = 0x9000, scoped, tag = 'internal scratch']
  %s0 = inlined_call_operand.vmem [shape: f32[8,32], index: 0, kind: input, shape index: {}]
  %s1 = inlined_call_operand.vmem [shape: f32[32,16], index: 1, kind: input, shape index: {}]
  %s2 = inlined_call_operand.vmem [shape: f32[1,16], index: 2, kind: input, shape index: {}]
  %s3 = inlined_call_operand.hbm [shape: f32[8,16], index: 3, kind: output, shape index: {}]
  %s4 = sld [smem:[#allocation0]]
  $region22: #{tpu_custom_call.1} parent=0
    _
  %s6 = ssub.s32 1, %s4
  %s7 = scalar_select 0, %s6, %s4
  $region1: #{tpu_custom_call.1} parent=0
    #allocation2 [shape = 'u8[4096]{0}', space=vmem, size = 0x1000, scoped, tag = 'output window, operand 0, single buffered']
    #allocation3 [shape = 's32[1]{0}', space=sflag, size = 0x4, scoped, tag = 'scoped memory for tpu_custom_call.1']
    %8 = vsyncpa [#allocation3], 0
    // Predicated region
    $region2: #{tpu_custom_call.1} parent=1 // pred_check
      _
    $region3: #{tpu_custom_call.1} parent=1 // pred_check_branch
      %10 = sbr.rel (0) target = $region5
    $region4: #{tpu_custom_call.1} parent=1 // pred_region
      _
    $region5: #{tpu_custom_call.1} parent=1 // pred_fallthru
      _
    // Predicated region
    $region6: #{tpu_custom_call.1} parent=1 // pred_check
      _
    $region7: #{tpu_custom_call.1} parent=1 // pred_check_branch
      %12 = sbr.rel (0) target = $region9
    $region8: #{tpu_custom_call.1} parent=1 // pred_region
      _
    $region9: #{tpu_custom_call.1} parent=1 // pred_fallthru
      _
    // Predicated region
    $region10: #{tpu_custom_call.1} parent=1 // pred_check
      _
    $region11: #{tpu_custom_call.1} parent=1 // pred_check_branch
      %14 = sbr.rel (0) target = $region13
    $region12: #{tpu_custom_call.1} parent=1 // pred_region
      _
    $region13: #{tpu_custom_call.1} parent=1 // pred_fallthru
      _
    %v15 = vld [vmem:[%s0] sm:$0xff]
    %v16 = vld [vmem:[%s1] sm:$0xff]
    %v17 = vld [vmem:[%s1 + $0x8] sm:$0xff]
    %v18 = vld [vmem:[%s1 + $0x10] sm:$0xff]
    %v19 = vld [vmem:[%s1 + $0x18] sm:$0xff]
    %v20 = vld [vmem:[%s2] sm:$0x1]
    %v22 = vperm.slane %v20, 0
    %vm24 = vcmask 261120
    %v26 = vsel %vm24, %v15, 0
    %28 = vmatpush.msra.mxu0 0.0
    %29 = vmatpush.msra.mxu0 0.0
    %30 = vmatpush.msra.mxu0 0.0
    %31 = vmatpush.msra.mxu0 0.0
    %32 = vmatpush.msra.mxu0 0.0
    %33 = vmatpush.msra.mxu0 0.0
    %34 = vmatpush.msra.mxu0 0.0
    %35 = vmatpush.msra.mxu0 0.0
    %36 = vmatpush.msra.mxu0 0.0
    %37 = vmatpush.msra.mxu0 0.0
    %38 = vmatpush.msra.mxu0 0.0
    %39 = vmatpush.msra.mxu0 0.0
    %40 = vmatpush.msra.mxu0 %v19
    %41 = vmatpush.msra.mxu0 %v18
    %42 = vmatpush.msra.mxu0 %v17
    %43 = vmatpush.msra.mxu0 %v16
    %44 = vmatmul.f32.gmra.mxu0 %v26
    %v45 = vpop.f32.mrf.mxu0
    %v46 = vadd.f32 %v22, %v45
    %47 = vdwg.mxu0
    %vm48 = vcmask 130048
    %49 = vst.msk [vmem:[#allocation2] sm:$0xff] %vm48, %v46
    // Predicated region
    $region14: #{tpu_custom_call.1} parent=1 // pred_check
      _
    $region15: #{tpu_custom_call.1} parent=1 // pred_check_branch
      %51 = sbr.rel (0) target = $region17
    $region16: #{tpu_custom_call.1} parent=1 // pred_region
      %53 = vsyncadd [#allocation3], 0
      %s55 = sshll.u32 [#allocation2], 4
      %s56 = int_to_ptr.vmem [resolvable:$true] %s55
      %s57 = sshll.u32 %s3, 4
      %s58 = int_to_ptr.hbm [resolvable:$true] %s57
      %60 = dma.vmem_to_hbm [thread:$0]  %s56, 128, %s58, [#allocation3]
    $region17: #{tpu_custom_call.1} parent=1 // pred_fallthru
      _
    // Predicated region
    $region18: #{tpu_custom_call.1} parent=1 // pred_check
      _
    $region19: #{tpu_custom_call.1} parent=1 // pred_check_branch
      %62 = sbr.rel (0) target = $region21
    $region20: #{tpu_custom_call.1} parent=1 // pred_region
      %64 = dma.done [#allocation3], 128
    $region21: #{tpu_custom_call.1} parent=1 // pred_fallthru
      _
    %65 = vsyncpa [#allocation3], 1

</llo_original>
